<compile_context>
chip_gen: v7x
topology: tpu7x:2x2x1
jax: 0.10.0
libtpu: 0.0.40
codegen_flags: <defaults>
</compile_context>

<pallas_src>
import jax
import jax.numpy as jnp
from jax import lax
from jax.experimental import pallas as pl
from jax.experimental.pallas import tpu as pltpu


def _make_focus_kernel(act):
    def kernel(w_ref, scale_ref, bias_ref, y_ref, o_ref):
        # w_ref:     (Cout, K)    conv weight matrix (K = 4*Cin), f32
        # scale_ref: (Cout, 1)    folded BN scale, f32
        # bias_ref:  (Cout, 1)    folded BN bias, f32
        # y_ref:     (1, K, TM)   space-to-depth features, flattened spatial
        # o_ref:     (1, Cout, TM)
        z = jnp.dot(w_ref[...], y_ref[0].astype(jnp.float32),
                    preferred_element_type=jnp.float32)
        z = z * scale_ref[...] + bias_ref[...]          # fused BatchNorm (eval)
        if act == "silu":
            z = z * (1.0 / (1.0 + jnp.exp(-z)))         # SiLU
        elif act == "relu":
            z = jnp.maximum(z, 0.0)
        elif act == "lrelu":
            z = jnp.where(z >= 0.0, z, 0.1 * z)
        else:
            raise ValueError(f"unsupported act: {act}")
        o_ref[0] = z.astype(o_ref.dtype)
    return kernel


def _pick_spatial_tile(m, preferred=4096):
    """Largest lane-dense tile (multiple of 128, or full extent) dividing m."""
    if m <= preferred:
        return m
    for cand in (preferred, 4096, 2048, 1024, 512, 256, 128):
        if cand <= preferred and m % cand == 0:
            return cand
    return preferred  # ragged last block is masked by Pallas


def focus_forward(x, conv_w, bn_gamma, bn_beta, bn_mean, bn_var, *,
                  eps=1e-5, act="silu", stride=1, block_m=4096):
    """Focus.forward: x NCHW -> space-to-depth -> 1x1 conv -> BN -> act.

    conv_w: (Cout, 4*Cin, 1, 1)  (PyTorch layout, bias=False)
    bn_*:   (Cout,) BatchNorm2d parameters / running stats (eval mode).
    """
    N, C, H, W = x.shape
    if H % 2 != 0 or W % 2 != 0:
        raise ValueError("Focus requires even H and W")
    Cout, K, kh, kw = conv_w.shape
    if (kh, kw) != (1, 1) or stride != 1:
        # TODO(synk): general ksize/stride BaseConv not implemented (module default is 1/1).
        raise NotImplementedError("only ksize=1, stride=1 BaseConv is supported")
    if K != 4 * C:
        raise ValueError("conv weight in_channels must be 4 * in_channels")

    Ho, Wo = H // 2, W // 2
    M = Ho * Wo

    # Space-to-depth, same concat order as the PyTorch module: tl, bl, tr, br.
    # Single XLA strided-slice/concat pass; the following reshape is free.
    y = jnp.concatenate(
        [x[..., ::2, ::2], x[..., 1::2, ::2], x[..., ::2, 1::2], x[..., 1::2, 1::2]],
        axis=1,
    ).reshape(N, K, M)

    # Fold BatchNorm (eval) into a per-output-channel scale / bias.
    inv_std = lax.rsqrt(bn_var.astype(jnp.float32) + eps)
    scale = (bn_gamma.astype(jnp.float32) * inv_std).reshape(Cout, 1)
    bias = (bn_beta.astype(jnp.float32)
            - bn_mean.astype(jnp.float32) * bn_gamma.astype(jnp.float32) * inv_std
            ).reshape(Cout, 1)
    wmat = conv_w.reshape(Cout, K).astype(jnp.float32)

    tm = _pick_spatial_tile(M, block_m)
    grid = (N, pl.cdiv(M, tm))

    out_flat = pl.pallas_call(
        _make_focus_kernel(act),
        out_shape=jax.ShapeDtypeStruct((N, Cout, M), x.dtype),
        grid=grid,
        in_specs=[
            pl.BlockSpec((Cout, K), lambda n, m: (0, 0)),   # weight (resident)
            pl.BlockSpec((Cout, 1), lambda n, m: (0, 0)),   # BN scale
            pl.BlockSpec((Cout, 1), lambda n, m: (0, 0)),   # BN bias
            pl.BlockSpec((1, K, tm), lambda n, m: (n, 0, m)),
        ],
        out_specs=pl.BlockSpec((1, Cout, tm), lambda n, m: (n, 0, m)),
        compiler_params=pltpu.CompilerParams(
            dimension_semantics=("parallel", "parallel"),
            vmem_limit_bytes=32 * 1024 * 1024,
        ),
    )(wmat, scale, bias, y)

    # Free reshape back to NCHW (no transpose).
    return out_flat.reshape(N, Cout, Ho, Wo)


def _reference_focus(x, conv_w, bn_gamma, bn_beta, bn_mean, bn_var,
                     eps=1e-5, act="silu"):
    """Plain-JAX reference mirroring the PyTorch Focus module."""
    y = jnp.concatenate(
        [x[..., ::2, ::2], x[..., 1::2, ::2], x[..., ::2, 1::2], x[..., 1::2, 1::2]],
        axis=1,
    )
    Cout = conv_w.shape[0]
    z = jnp.einsum("ok,nkhw->nohw", conv_w.reshape(Cout, -1), y,
                   preferred_element_type=jnp.float32)
    inv_std = lax.rsqrt(bn_var + eps)
    scale = (bn_gamma * inv_std)[None, :, None, None]
    shift = (bn_beta - bn_mean * bn_gamma * inv_std)[None, :, None, None]
    z = z * scale + shift
    if act == "silu":
        z = z * jax.nn.sigmoid(z)
    elif act == "relu":
        z = jnp.maximum(z, 0.0)
    elif act == "lrelu":
        z = jnp.where(z >= 0.0, z, 0.1 * z)
    return z.astype(x.dtype)


if __name__ == "__main__":
    key = jax.random.PRNGKey(0)
    k1, k2, k3, k4, k5, k6 = jax.random.split(key, 6)

    # Small shapes consistent with the module: NCHW input, Cout from BaseConv.
    N, Cin, H, W = 2, 4, 16, 16
    Cout = 32

    x = jax.random.normal(k1, (N, Cin, H, W), dtype=jnp.float32)
    conv_w = jax.random.normal(k2, (Cout, 4 * Cin, 1, 1), dtype=jnp.float32) * 0.1
    bn_gamma = 1.0 + 0.1 * jax.random.normal(k3, (Cout,), dtype=jnp.float32)
    bn_beta = 0.1 * jax.random.normal(k4, (Cout,), dtype=jnp.float32)
    bn_mean = 0.1 * jax.random.normal(k5, (Cout,), dtype=jnp.float32)
    bn_var = jax.random.uniform(k6, (Cout,), dtype=jnp.float32,
                                minval=0.5, maxval=1.5)

    out = focus_forward(x, conv_w, bn_gamma, bn_beta, bn_mean, bn_var)
    out = jax.block_until_ready(out)

    ref = _reference_focus(x, conv_w, bn_gamma, bn_beta, bn_mean, bn_var)
    assert out.shape == ref.shape == (N, Cout, H // 2, W // 2), (out.shape, ref.shape)
    assert jnp.allclose(out, ref, atol=1e-4, rtol=1e-4), float(
        jnp.max(jnp.abs(out - ref)))

    print("KERNEL_OK")
</pallas_src>

<mosaic_0001>
module attributes {stable_mosaic.version = 11 : i64} {
  func.func @kernel(%arg0: i32, %arg1: i32, %arg2: memref<32x16xf32, #tpu.memory_space<vmem>>, %arg3: memref<32x1xf32, #tpu.memory_space<vmem>>, %arg4: memref<32x1xf32, #tpu.memory_space<vmem>>, %arg5: memref<1x16x64xf32, #tpu.memory_space<vmem>>, %arg6: memref<1x32x64xf32, #tpu.memory_space<vmem>>) attributes {dimension_semantics = [#tpu.dimension_semantics<parallel>, #tpu.dimension_semantics<parallel>], iteration_bounds = array<i64: 2, 1>, scalar_prefetch = 0 : i64, scratch_operands = 0 : i64, tpu.core_type = #tpu.core_type<tc>, window_params = [{pipeline_mode = #tpu.pipeline_mode<synchronous>, transform_indices = @transform_0, window_bounds = array<i64: 32, 16>}, {pipeline_mode = #tpu.pipeline_mode<synchronous>, transform_indices = @transform_1, window_bounds = array<i64: 32, 1>}, {pipeline_mode = #tpu.pipeline_mode<synchronous>, transform_indices = @transform_2, window_bounds = array<i64: 32, 1>}, {transform_indices = @transform_3, window_bounds = array<i64: 1, 16, 64>}, {transform_indices = @transform_4, window_bounds = array<i64: 1, 32, 64>}]} {
    %c0 = arith.constant 0 : index
    %c0_0 = arith.constant 0 : index
    %0 = vector.load %arg2[%c0, %c0_0] : memref<32x16xf32, #tpu.memory_space<vmem>>, vector<32x16xf32>
    %c0_1 = arith.constant 0 : index
    %c0_2 = arith.constant 0 : index
    %c0_3 = arith.constant 0 : index
    %1 = vector.load %arg5[%c0_1, %c0_2, %c0_3] : memref<1x16x64xf32, #tpu.memory_space<vmem>>, vector<1x16x64xf32>
    %2 = vector.shape_cast %1 : vector<1x16x64xf32> to vector<16x64xf32>
    %cst = arith.constant dense<0.000000e+00> : vector<32x64xf32>
    %3 = tpu.matmul %0, %2, %cst {dimension_numbers = #tpu.dot_dimension_numbers<[1], [0], [0], [1], [0, 0, 1, 1], [], []>} : vector<32x16xf32>, vector<16x64xf32>, vector<32x64xf32> -> vector<32x64xf32>
    %c0_4 = arith.constant 0 : index
    %c0_5 = arith.constant 0 : index
    %4 = vector.load %arg3[%c0_4, %c0_5] : memref<32x1xf32, #tpu.memory_space<vmem>>, vector<32x1xf32>
    %5 = vector.broadcast %4 : vector<32x1xf32> to vector<32x64xf32>
    %6 = arith.mulf %3, %5 : vector<32x64xf32>
    %c0_6 = arith.constant 0 : index
    %c0_7 = arith.constant 0 : index
    %7 = vector.load %arg4[%c0_6, %c0_7] : memref<32x1xf32, #tpu.memory_space<vmem>>, vector<32x1xf32>
    %8 = vector.broadcast %7 : vector<32x1xf32> to vector<32x64xf32>
    %9 = arith.addf %6, %8 : vector<32x64xf32>
    %cst_8 = arith.constant 0.000000e+00 : f32
    %10 = vector.broadcast %cst_8 : f32 to vector<32x64xf32>
    %11 = arith.subf %10, %9 : vector<32x64xf32>
    %12 = math.exp %11 : vector<32x64xf32>
    %cst_9 = arith.constant 1.000000e+00 : f32
    %13 = vector.broadcast %cst_9 : f32 to vector<32x64xf32>
    %14 = arith.addf %13, %12 : vector<32x64xf32>
    %cst_10 = arith.constant 1.000000e+00 : f32
    %15 = vector.broadcast %cst_10 : f32 to vector<32x64xf32>
    %16 = arith.divf %15, %14 : vector<32x64xf32>
    %17 = arith.mulf %9, %16 : vector<32x64xf32>
    %c0_11 = arith.constant 0 : index
    %c0_12 = arith.constant 0 : index
    %c0_13 = arith.constant 0 : index
    %18 = vector.load %arg6[%c0_11, %c0_12, %c0_13] : memref<1x32x64xf32, #tpu.memory_space<vmem>>, vector<1x32x64xf32>
    %19 = vector.shape_cast %18 : vector<1x32x64xf32> to vector<32x64xf32>
    %20 = vector.shape_cast %17 : vector<32x64xf32> to vector<1x32x64xf32>
    tpu.vector_store %arg6[%c0_11, %c0_12, %c0_13], %20 {strides = array<i32>} : memref<1x32x64xf32, #tpu.memory_space<vmem>>, vector<1x32x64xf32>,
    return
  }
  func.func @transform_0(%arg0: i32, %arg1: i32) -> (i32, i32) {
    %c0_i32 = arith.constant 0 : i32
    %c0_i32_0 = arith.constant 0 : i32
    %c0_i32_1 = arith.constant 0 : i32
    return %c0_i32, %c0_i32_0 : i32, i32
  }
  func.func @transform_1(%arg0: i32, %arg1: i32) -> (i32, i32) {
    %c0_i32 = arith.constant 0 : i32
    %c0_i32_0 = arith.constant 0 : i32
    %c0_i32_1 = arith.constant 0 : i32
    return %c0_i32, %c0_i32_0 : i32, i32
  }
  func.func @transform_2(%arg0: i32, %arg1: i32) -> (i32, i32) {
    %c0_i32 = arith.constant 0 : i32
    %c0_i32_0 = arith.constant 0 : i32
    %c0_i32_1 = arith.constant 0 : i32
    return %c0_i32, %c0_i32_0 : i32, i32
  }
  func.func @transform_3(%arg0: i32, %arg1: i32) -> (i32, i32, i32) {
    %c0_i32 = arith.constant 0 : i32
    %c0_i32_0 = arith.constant 0 : i32
    return %arg0, %c0_i32, %arg1 : i32, i32, i32
  }
  func.func @transform_4(%arg0: i32, %arg1: i32) -> (i32, i32, i32) {
    %c0_i32 = arith.constant 0 : i32
    %c0_i32_0 = arith.constant 0 : i32
    return %arg0, %c0_i32, %arg1 : i32, i32, i32
  }
}

</mosaic_0001>

<llo_original>
// kernel: tpu_custom_call.1
$region0: #{tpu_custom_call.1}
  #allocation0 [shape = 'u32[]', space=smem, size = 0x4, offset = 0x4, fixed_abs, tag = 'smem constant byte address 0x4 - core index']
  #allocation1 [shape = 'u32[144,128]{1,0:T(1,128)}', space=vmem, size = 0x12000, scoped, tag = 'internal scratch']
  %s0 = inlined_call_operand.vmem [shape: f32[32,16], index: 0, kind: input, shape index: {}]
  %s1 = inlined_call_operand.vmem [shape: f32[32,1], index: 1, kind: input, shape index: {}]
  %s2 = inlined_call_operand.vmem [shape: f32[32,1], index: 2, kind: input, shape index: {}]
  %s3 = inlined_call_operand.vmem [shape: f32[2,16,64], index: 3, kind: input, shape index: {}]
  %s4 = inlined_call_operand.hbm [shape: f32[2,32,64], index: 4, kind: output, shape index: {}]
  %s5 = sld [smem:[#allocation0]]
  $region49: #{tpu_custom_call.1} parent=0
    _
  %s7 = ssub.s32 1, %s5
  %s8 = scalar_select 0, %s7, %s5
  $region1: #{tpu_custom_call.1} parent=0
    #allocation2 [shape = 'u8[32768]{0}', space=vmem, size = 0x8000, scoped, tag = 'output window, operand 0']
    #allocation3 [shape = 's32[2]{0}', space=sflag, size = 0x8, scoped, tag = 'scoped memory for tpu_custom_call.1']
    %9 = vsyncpa [#allocation3], 0
    %s10 = scalar_lea.sflag [#allocation3], 1
    %11 = vsyncpa %s10, 0
    loop: start=0, step=1, limit=4
    $region2: #{tpu_custom_call.1} parent=1 // loop_pre_header
      _
    $region3: #{tpu_custom_call.1} parent=1 // loop_header
      %s13 = sphi 0, %s17
      %p14 = scmp.ge.s32.totalorder %s13, 4
      %s20 = sphi 0, %s32
      %s21 = sphi 0, %s28
      %s22 = sphi 0, %s20
      %s23 = sphi 0, %s21
      %s24 = sphi 0, %s22
      %s25 = sphi 0, %s23
      %s33 = sphi 0, %s33
      %s35 = sphi 0, %s33
      %s36 = sphi 0, %s35
      %s50 = sphi 0, %s36
      %s54 = sphi 0, %s54
      %s56 = sphi 0, %s54
      %s57 = sphi 0, %s56
      %s71 = sphi 0, %s57
      %s75 = sphi 0, %s75
      %s77 = sphi 0, %s75
      %s78 = sphi 0, %s77
      %s92 = sphi 0, %s78
      %s100 = sphi 0, %s102
      %s103 = sphi 0, %s100
      %s104 = sphi 0, %s103
      %s120 = sphi 0, %s104
      %s128 = sphi 0, %s130
      %s131 = sphi 0, %s128
      %s132 = sphi 0, %s131
      %s148 = sphi 0, %s132
    $region4: #{tpu_custom_call.1} parent=1 // loop_header_branch
      %16 = sbr.rel (%p14) target = $region8
    $region5: #{tpu_custom_call.1} parent=1 // loop_body
      %s18 = ssub.s32 %s13, 1
      %s19 = ssub.s32 %s13, 2
      %s26 = sadd.s32 1, %s21
      %p27 = scmp.ge.s32.totalorder %s26, 1
      %s28 = scalar_select %p27, 0, %s26
      %s29 = sadd.s32 1, %s20
      %s30 = scalar_select %p27, %s29, %s20
      %p31 = scmp.ge.s32.totalorder %s30, 2
      %s32 = scalar_select %p31, 0, %s30
      %s34 = sadd.s32 %s33, 1
      %p37 = scmp.eq.s32.totalorder %s13, 1
      %p38 = scmp.ne.s32.totalorder %s33, %s35
      %p39 = scmp.eq.s32.totalorder %s13, 0
      %p40 = por %p38, %p39
      %p41 = scmp.ne.s32.totalorder %s33, %s35
      %p42 = scmp.eq.s32.totalorder %s18, 1
      %p43 = por %p41, %p42
      %p44 = scmp.ne.s32.totalorder %s35, %s36
      %p45 = scmp.eq.s32.totalorder %s18, 0
      %p46 = por %p44, %p45
      %p47 = scmp.ne.s32.totalorder %s35, %s36
      %p48 = scmp.eq.s32.totalorder %s19, 1
      %p49 = por %p47, %p48
      %p51 = scmp.ne.s32.totalorder %s36, %s50
      %p52 = scmp.eq.s32.totalorder %s19, 0
      %p53 = por %p51, %p52
      %s55 = sadd.s32 %s54, 1
      %p58 = scmp.eq.s32.totalorder %s13, 1
      %p59 = scmp.ne.s32.totalorder %s54, %s56
      %p60 = scmp.eq.s32.totalorder %s13, 0
      %p61 = por %p59, %p60
      %p62 = scmp.ne.s32.totalorder %s54, %s56
      %p63 = scmp.eq.s32.totalorder %s18, 1
      %p64 = por %p62, %p63
      %p65 = scmp.ne.s32.totalorder %s56, %s57
      %p66 = scmp.eq.s32.totalorder %s18, 0
      %p67 = por %p65, %p66
      %p68 = scmp.ne.s32.totalorder %s56, %s57
      %p69 = scmp.eq.s32.totalorder %s19, 1
      %p70 = por %p68, %p69
      %p72 = scmp.ne.s32.totalorder %s57, %s71
      %p73 = scmp.eq.s32.totalorder %s19, 0
      %p74 = por %p72, %p73
      %s76 = sadd.s32 %s75, 1
      %p79 = scmp.eq.s32.totalorder %s13, 1
      %p80 = scmp.ne.s32.totalorder %s75, %s77
      %p81 = scmp.eq.s32.totalorder %s13, 0
      %p82 = por %p80, %p81
      %p83 = scmp.ne.s32.totalorder %s75, %s77
      %p84 = scmp.eq.s32.totalorder %s18, 1
      %p85 = por %p83, %p84
      %p86 = scmp.ne.s32.totalorder %s77, %s78
      %p87 = scmp.eq.s32.totalorder %s18, 0
      %p88 = por %p86, %p87
      %p89 = scmp.ne.s32.totalorder %s77, %s78
      %p90 = scmp.eq.s32.totalorder %s19, 1
      %p91 = por %p89, %p90
      %p93 = scmp.ne.s32.totalorder %s78, %s92
      %p94 = scmp.eq.s32.totalorder %s19, 0
      %p95 = por %p93, %p94
      %s96 = ssub.s32 %s20, %s32
      %s97 = ssub.s32 %s21, %s28
      %s98 = sor.u32 %s96, %s97
      %p99 = scmp.eq.s32.totalorder %s98, 0
      %s101 = sadd.s32 %s100, 1
      %s102 = scalar_select %p99, %s100, %s101
      %p105 = pneg %p99
      %p106 = scmp.eq.s32.totalorder %s13, 1
      %p107 = por %p105, %p106
      %p108 = scmp.ne.s32.totalorder %s100, %s103
      %p109 = scmp.eq.s32.totalorder %s13, 0
      %p110 = por %p108, %p109
      %p111 = scmp.ne.s32.totalorder %s100, %s103
      %p112 = scmp.eq.s32.totalorder %s18, 1
      %p113 = por %p111, %p112
      %p114 = scmp.ne.s32.totalorder %s103, %s104
      %p115 = scmp.eq.s32.totalorder %s18, 0
      %p116 = por %p114, %p115
      %p117 = scmp.ne.s32.totalorder %s103, %s104
      %p118 = scmp.eq.s32.totalorder %s19, 1
      %p119 = por %p117, %p118
      %p121 = scmp.ne.s32.totalorder %s104, %s120
      %p122 = scmp.eq.s32.totalorder %s19, 0
      %p123 = por %p121, %p122
      %s124 = ssub.s32 %s20, %s32
      %s125 = ssub.s32 %s21, %s28
      %s126 = sor.u32 %s124, %s125
      %p127 = scmp.eq.s32.totalorder %s126, 0
      %s129 = sadd.s32 %s128, 1
      %s130 = scalar_select %p127, %s128, %s129
      %p133 = pneg %p127
      %p134 = scmp.eq.s32.totalorder %s13, 1
      %p135 = por %p133, %p134
      %p136 = scmp.ne.s32.totalorder %s128, %s131
      %p137 = scmp.eq.s32.totalorder %s13, 0
      %p138 = por %p136, %p137
      %p139 = scmp.ne.s32.totalorder %s128, %s131
      %p140 = scmp.eq.s32.totalorder %s18, 1
      %p141 = por %p139, %p140
      %p142 = scmp.ne.s32.totalorder %s131, %s132
      %p143 = scmp.eq.s32.totalorder %s18, 0
      %p144 = por %p142, %p143
      %p145 = scmp.ne.s32.totalorder %s131, %s132
      %p146 = scmp.eq.s32.totalorder %s19, 1
      %p147 = por %p145, %p146
      %p149 = scmp.ne.s32.totalorder %s132, %s148
      %p150 = scmp.eq.s32.totalorder %s19, 0
      %p151 = por %p149, %p150
      %p152 = scmp.le.s32.totalorder 1, %s13
      %p153 = scmp.lt.s32.totalorder %s13, 3
      %p154 = pnand %p152, %p153
      %p155 = pneg %p154
      // Predicated region
      $region9: #{tpu_custom_call.1} parent=5 // pred_check
        _
      $region10: #{tpu_custom_call.1} parent=5 // pred_check_branch
        %157 = sbr.rel (%p154) target = $region12
      $region11: #{tpu_custom_call.1} parent=5 // pred_region
        %s158 = ssub.s32 %s13, 1
        // Predicated region
        $region13: #{tpu_custom_call.1} parent=11 // pred_check
          %p159 = pneg %p46
        $region14: #{tpu_custom_call.1} parent=11 // pred_check_branch
          %161 = sbr.rel (%p159) target = $region16
        $region15: #{tpu_custom_call.1} parent=11 // pred_region
          _
        $region16: #{tpu_custom_call.1} parent=11 // pred_fallthru
          _
        // Predicated region
        $region17: #{tpu_custom_call.1} parent=11 // pred_check
          %p162 = pneg %p67
        $region18: #{tpu_custom_call.1} parent=11 // pred_check_branch
          %164 = sbr.rel (%p162) target = $region20
        $region19: #{tpu_custom_call.1} parent=11 // pred_region
          _
        $region20: #{tpu_custom_call.1} parent=11 // pred_fallthru
          _
        // Predicated region
        $region21: #{tpu_custom_call.1} parent=11 // pred_check
          %p165 = pneg %p88
        $region22: #{tpu_custom_call.1} parent=11 // pred_check_branch
          %167 = sbr.rel (%p165) target = $region24
        $region23: #{tpu_custom_call.1} parent=11 // pred_region
          _
        $region24: #{tpu_custom_call.1} parent=11 // pred_fallthru
          _
      $region12: #{tpu_custom_call.1} parent=5 // pred_fallthru
        _
      %p168 = scmp.lt.s32.totalorder %s13, 2
      // Predicated region
      $region25: #{tpu_custom_call.1} parent=5 // pred_check
        %p169 = pneg %p168
      $region26: #{tpu_custom_call.1} parent=5 // pred_check_branch
        %171 = sbr.rel (%p169) target = $region28
      $region27: #{tpu_custom_call.1} parent=5 // pred_region
        // Predicated region
        $region29: #{tpu_custom_call.1} parent=27 // pred_check
          %p172 = pneg %p110
        $region30: #{tpu_custom_call.1} parent=27 // pred_check_branch
          %174 = sbr.rel (%p172) target = $region32
        $region31: #{tpu_custom_call.1} parent=27 // pred_region
          %p175 = scmp.lt.s32.totalorder %s20, 1
          %s176 = scalar_select %p175, %s20, 1
          %p177 = scmp.lt.s32.totalorder %s21, 0
          %s178 = scalar_select %p177, %s21, 0
          %s179 = smul.addr %s176, 2
          %s180 = sadd.s32 %s178, %s179
          %s181 = smul.addr %s180, 8
          %s182 = scalar_lea.vmem %s3, %s181
        $region32: #{tpu_custom_call.1} parent=27 // pred_fallthru
          _
      $region28: #{tpu_custom_call.1} parent=5 // pred_fallthru
        _
      %p183 = scmp.le.s32.totalorder 1, %s13
      %p184 = scmp.lt.s32.totalorder %s13, 3
      %p185 = pnand %p183, %p184
      %p186 = pneg %p185
      // Predicated region
      $region33: #{tpu_custom_call.1} parent=5 // pred_check
        _
      $region34: #{tpu_custom_call.1} parent=5 // pred_check_branch
        %188 = sbr.rel (%p185) target = $region36
      $region35: #{tpu_custom_call.1} parent=5 // pred_region
        %s189 = ssub.s32 %s13, 1
        %p190 = pneg %p46
        %p191 = pneg %p43
        %p192 = pneg %p67
        %p193 = pneg %p64
        %p194 = pneg %p88
        %p195 = pneg %p85
        %p196 = scmp.lt.s32.totalorder %s22, 1
        %s197 = scalar_select %p196, %s22, 1
        %p198 = scmp.lt.s32.totalorder %s23, 0
        %s199 = scalar_select %p198, %s23, 0
        %s200 = smul.addr %s197, 2
        %s201 = sadd.s32 %s199, %s200
        %s202 = smul.addr %s201, 8
        %s203 = scalar_lea.vmem %s3, %s202
        %p204 = pneg %p116
        %p205 = pneg %p113
        %p206 = pneg %p144
        %p207 = pneg %p141
        %s208 = sand.u32 %s131, 1
        %s209 = scalar_lea.sflag [#allocation3], %s208
        %s210 = sand.u32 %s131, 1
        %s211 = smul.addr %s210, 32
        %s212 = scalar_lea.vmem [#allocation2], %s211
        %p213 = scmp.lt.s32.totalorder %s22, 1
        %s214 = scalar_select %p213, %s22, 1
        %p215 = scmp.lt.s32.totalorder %s23, 0
        %s216 = scalar_select %p215, %s23, 0
        %s217 = smul.addr %s214, 2
        %s218 = sadd.s32 %s216, %s217
        %s219 = smul.addr %s218, 8
        %s220 = scalar_lea.vmem %s3, %s219
        %v221 = vld [vmem:[%s0] sm:$0xff]
        %v222 = vld [vmem:[%s0 + $0x8] sm:$0xff]
        %v223 = vld [vmem:[%s0 + $0x10] sm:$0xff]
        %v224 = vld [vmem:[%s0 + $0x18] sm:$0xff]
        %v225 = vld [vmem:[%s220] sm:$0xff]
        %v226 = vld [vmem:[%s220 + $0x8] sm:$0xff]
        %vm227 = vcmask 130048
        %v229 = vsel %vm227, %v221, 0
        %v232 = vsel %vm227, %v222, 0
        %v235 = vsel %vm227, %v223, 0
        %v238 = vsel %vm227, %v224, 0
        %240 = vmatprep.subr.mxu0 0.0
        %241 = vmatpush1.msra.mxu0 %v225
        %242 = vmatprep.subr.mxu0 0.0
        %243 = vmatpush1.msra.mxu0 %v226
        %244 = vmatprep.subr.mxu0 0.0
        %245 = vmatpush1.msra.mxu0 0.0
        %246 = vmatprep.subr.mxu0 0.0
        %247 = vmatpush1.msra.mxu0 0.0
        %248 = vmatprep.subr.mxu0 0.0
        %249 = vmatpush1.msra.mxu0 0.0
        %250 = vmatprep.subr.mxu0 0.0
        %251 = vmatpush1.msra.mxu0 0.0
        %252 = vmatprep.subr.mxu0 0.0
        %253 = vmatpush1.msra.mxu0 0.0
        %254 = vmatprep.subr.mxu0 0.0
        %255 = vmatpush1.msra.mxu0 0.0
        %256 = vmatprep.subr.mxu0 0.0
        %257 = vmatpush1.msra.mxu0 0.0
        %258 = vmatprep.subr.mxu0 0.0
        %259 = vmatpush1.msra.mxu0 0.0
        %260 = vmatprep.subr.mxu0 0.0
        %261 = vmatpush1.msra.mxu0 0.0
        %262 = vmatprep.subr.mxu0 0.0
        %263 = vmatpush1.msra.mxu0 0.0
        %264 = vmatprep.subr.mxu0 0.0
        %265 = vmatpush1.msra.mxu0 0.0
        %266 = vmatprep.subr.mxu0 0.0
        %267 = vmatpush1.msra.mxu0 0.0
        %268 = vmatprep.subr.mxu0 0.0
        %269 = vmatpush1.msra.mxu0 0.0
        %270 = vmatprep.subr.mxu0 0.0
        %271 = vmatpush1.msra.mxu0 0.0
        %272 = vmatprep.subr.mxu0 0.0
        %273 = vmatpush1.msra.mxu0 0.0
        %274 = vmatprep.subr.mxu0 0.0
        %275 = vmatpush1.msra.mxu0 0.0
        %276 = vmatprep.subr.mxu0 0.0
        %277 = vmatpush1.msra.mxu0 0.0
        %278 = vmatprep.subr.mxu0 0.0
        %279 = vmatpush1.msra.mxu0 0.0
        %280 = vmatprep.subr.mxu0 0.0
        %281 = vmatpush1.msra.mxu0 0.0
        %282 = vmatprep.subr.mxu0 0.0
        %283 = vmatpush1.msra.mxu0 0.0
        %284 = vmatprep.subr.mxu0 0.0
        %285 = vmatpush1.msra.mxu0 0.0
        %286 = vmatprep.subr.mxu0 0.0
        %287 = vmatpush1.msra.mxu0 0.0
        %288 = vmatprep.subr.mxu0 0.0
        %289 = vmatpush1.msra.mxu0 0.0
        %290 = vmatprep.subr.mxu0 0.0
        %291 = vmatpush1.msra.mxu0 0.0
        %292 = vmatprep.subr.mxu0 0.0
        %293 = vmatpush1.msra.mxu0 0.0
        %294 = vmatprep.subr.mxu0 0.0
        %295 = vmatpush1.msra.mxu0 0.0
        %296 = vmatprep.subr.mxu0 0.0
        %297 = vmatpush1.msra.mxu0 0.0
        %298 = vmatprep.subr.mxu0 0.0
        %299 = vmatpush1.msra.mxu0 0.0
        %300 = vmatprep.subr.mxu0 0.0
        %301 = vmatpush1.msra.mxu0 0.0
        %302 = vmatprep.subr.mxu0 0.0
        %303 = vmatpush1.msra.mxu0 0.0
        %304 = vmatprep.mubr.f32.mxu0 0.0
        %305 = vmatmul.mubr.f32.gmra.mrb[0].mxu0 %v229
        %v306 = vpop.f32.mrb[0].mxu0
        %v307 = vadd.f32 0.0, %v306
        %v308 = vpop.f32.mrb[0].mxu0
        %309 = vmatprep.mubr.f32.mxu0 0.0
        %310 = vmatmul.mubr.f32.gmra.mrb[0].mxu0 %v232
        %v311 = vpop.f32.mrb[0].mxu0
        %v312 = vadd.f32 0.0, %v311
        %v313 = vpop.f32.mrb[0].mxu0
        %314 = vmatprep.mubr.f32.mxu0 0.0
        %315 = vmatmul.mubr.f32.gmra.mrb[0].mxu0 %v235
        %v316 = vpop.f32.mrb[0].mxu0
        %v317 = vadd.f32 0.0, %v316
        %v318 = vpop.f32.mrb[0].mxu0
        %319 = vmatprep.mubr.f32.mxu0 0.0
        %320 = vmatmul.mubr.f32.gmra.mrb[0].mxu0 %v238
        %v321 = vpop.f32.mrb[0].mxu0
        %v322 = vadd.f32 0.0, %v321
        %v323 = vpop.f32.mrb[0].mxu0
        %324 = vdwg.mxu0
        %v325 = vld [vmem:[%s1] sm:$0xff]
        %v326 = vld [vmem:[%s1 + $0x8] sm:$0xff]
        %v327 = vld [vmem:[%s1 + $0x10] sm:$0xff]
        %v328 = vld [vmem:[%s1 + $0x18] sm:$0xff]
        %330 = vset.pattern.permute.xlu0 0
        %331 = vperm.xlu0 %330, %v325
        %v332 = vpop.permute.xlu0 %331
        %335 = vset.pattern.permute.xlu0 0
        %336 = vperm.xlu0 %335, %v326
        %v337 = vpop.permute.xlu0 %336
        %340 = vset.pattern.permute.xlu0 0
        %341 = vperm.xlu0 %340, %v327
        %v342 = vpop.permute.xlu0 %341
        %345 = vset.pattern.permute.xlu0 0
        %346 = vperm.xlu0 %345, %v328
        %v347 = vpop.permute.xlu0 %346
        %v349 = vmul.f32 %v307, %v332
        %v350 = vmul.f32 %v312, %v337
        %v351 = vmul.f32 %v317, %v342
        %v352 = vmul.f32 %v322, %v347
        %v353 = vld [vmem:[%s2] sm:$0xff]
        %v354 = vld [vmem:[%s2 + $0x8] sm:$0xff]
        %v355 = vld [vmem:[%s2 + $0x10] sm:$0xff]
        %v356 = vld [vmem:[%s2 + $0x18] sm:$0xff]
        %358 = vset.pattern.permute.xlu0 0
        %359 = vperm.xlu0 %358, %v353
        %v360 = vpop.permute.xlu0 %359
        %363 = vset.pattern.permute.xlu0 0
        %364 = vperm.xlu0 %363, %v354
        %v365 = vpop.permute.xlu0 %364
        %368 = vset.pattern.permute.xlu0 0
        %369 = vperm.xlu0 %368, %v355
        %v370 = vpop.permute.xlu0 %369
        %373 = vset.pattern.permute.xlu0 0
        %374 = vperm.xlu0 %373, %v356
        %v375 = vpop.permute.xlu0 %374
        %v377 = vadd.f32 %v349, %v360
        %v378 = vadd.f32 %v350, %v365
        %v379 = vadd.f32 %v351, %v370
        %v380 = vadd.f32 %v352, %v375
        %v381 = vsub.f32 0.0, %v377
        %v382 = vsub.f32 0.0, %v378
        %v383 = vsub.f32 0.0, %v379
        %v384 = vsub.f32 0.0, %v380
        %v385 = vmul.f32 %v381, 1.442695
        %v386 = vpow.pop %v385
        %v387 = vmul.f32 %v382, 1.442695
        %v388 = vpow.pop %v387
        %v389 = vmul.f32 %v383, 1.442695
        %v390 = vpow.pop %v389
        %v391 = vmul.f32 %v384, 1.442695
        %v392 = vpow.pop %v391
        %v393 = vadd.f32 %v386, 1.0
        %v394 = vadd.f32 %v388, 1.0
        %v395 = vadd.f32 %v390, 1.0
        %v396 = vadd.f32 %v392, 1.0
        %v397 = vrcp.pop %v393
        %v398 = vmul.f32 1.0, %v397
        %v399 = vrcp.pop %v394
        %v400 = vmul.f32 1.0, %v399
        %v401 = vrcp.pop %v395
        %v402 = vmul.f32 1.0, %v401
        %v403 = vrcp.pop %v396
        %v404 = vmul.f32 1.0, %v403
        %v405 = vmul.f32 %v377, %v398
        %v406 = vmul.f32 %v378, %v400
        %v407 = vmul.f32 %v379, %v402
        %v408 = vmul.f32 %v380, %v404
        %vm409 = vcmask 523264
        %410 = vst.msk [vmem:[%s212] sm:$0xff] %vm409, %v405
        %411 = vst.msk [vmem:[%s212 + $0x8] sm:$0xff] %vm409, %v406
        %412 = vst.msk [vmem:[%s212 + $0x10] sm:$0xff] %vm409, %v407
        %413 = vst.msk [vmem:[%s212 + $0x18] sm:$0xff] %vm409, %v408
        %s414 = sand.u32 %s131, 1
        %s415 = scalar_lea.sflag [#allocation3], %s414
        %s416 = sand.u32 %s131, 1
        %s417 = smul.addr %s416, 32
        %s418 = scalar_lea.vmem [#allocation2], %s417
        // Predicated region
        $region37: #{tpu_custom_call.1} parent=35 // pred_check
          %p419 = pneg %p141
        $region38: #{tpu_custom_call.1} parent=35 // pred_check_branch
          %421 = sbr.rel (%p419) target = $region40
        $region39: #{tpu_custom_call.1} parent=35 // pred_region
          %s423 = ssub.s32 512, 512
          %424 = vsyncadd %s415, %s423
          %s425 = smul.addr %s22, 4
          %s426 = sadd.s32 %s23, %s425
          %s427 = smul.addr %s426, 128
          %s428 = scalar_lea.hbm %s4, %s427
          %s429 = sshll.u32 %s418, 4
          %s430 = int_to_ptr.vmem [resolvable:$true] %s429
          %435 = dma.vmem_to_hbm [thread:$0]  %s430, 512, %s428, %s415, 128, 128, 8
        $region40: #{tpu_custom_call.1} parent=35 // pred_fallthru
          _
      $region36: #{tpu_custom_call.1} parent=5 // pred_fallthru
        _
      %p436 = scmp.le.s32.totalorder 2, %s13
      // Predicated region
      $region41: #{tpu_custom_call.1} parent=5 // pred_check
        %p437 = pneg %p436
      $region42: #{tpu_custom_call.1} parent=5 // pred_check_branch
        %439 = sbr.rel (%p437) target = $region44
      $region43: #{tpu_custom_call.1} parent=5 // pred_region
        %s440 = ssub.s32 %s13, 2
        // Predicated region
        $region45: #{tpu_custom_call.1} parent=43 // pred_check
          %p441 = pneg %p147
        $region46: #{tpu_custom_call.1} parent=43 // pred_check_branch
          %443 = sbr.rel (%p441) target = $region48
        $region47: #{tpu_custom_call.1} parent=43 // pred_region
          %s444 = sand.u32 %s132, 1
          %s445 = scalar_lea.sflag [#allocation3], %s444
          %s446 = sand.u32 %s132, 1
          %s447 = smul.addr %s446, 32
          %s448 = scalar_lea.vmem [#allocation2], %s447
          %449 = dma.done %s445, 512
        $region48: #{tpu_custom_call.1} parent=43 // pred_fallthru
          _
      $region44: #{tpu_custom_call.1} parent=5 // pred_fallthru
        _
    $region6: #{tpu_custom_call.1} parent=1 // loop_footer
      %s17 = sadd.s32 1, %s13
    $region7: #{tpu_custom_call.1} parent=1 // loop_footer_branch
      %12 = sbr.rel target = $region3
    $region8: #{tpu_custom_call.1} parent=1 // loop_exit
      _
    %450 = vsyncpa [#allocation3], 1
    %s451 = scalar_lea.sflag [#allocation3], 1
    %452 = vsyncpa %s451, 1

</llo_original>
